<compile_context>
chip_gen: v5e
topology: v5e:2x2
jax: 0.10.0
libtpu: 0.0.40
codegen_flags: <defaults>
</compile_context>

<pallas_src>
import functools

import jax
import jax.numpy as jnp
import numpy as np
from jax.experimental import pallas as pl
from jax.experimental.pallas import tpu as pltpu


def _edge_loss_kernel(pred_ref, gt_ref, out_ref):
    """pred_ref / gt_ref: (3, 3, Bt, Ft) f32 VMEM  [xyz, face-vertex, batch, face].
    out_ref: (1, 1, Ft) f32 VMEM — lane-dense partial sums (batch reduced)."""
    eps = jnp.float32(1e-8)

    def lengths(ref):
        # Load each (Bt, Ft) coordinate slab exactly once; all indexing is on
        # leading dims, so lanes (faces) and sublanes (batch) stay dense.
        v = [[ref[c, k] for k in range(3)] for c in range(3)]  # [xyz][vertex]

        def elen(a, b):
            dx = v[0][a] - v[0][b]
            dy = v[1][a] - v[1][b]
            dz = v[2][a] - v[2][b]
            return jnp.sqrt(dx * dx + dy * dy + dz * dz + eps)  # (Bt, Ft)

        return elen(0, 1), elen(0, 2), elen(1, 2)

    p01, p02, p12 = lengths(pred_ref)
    g01, g02, g12 = lengths(gt_ref)

    total = (jnp.abs(p01 - g01) + jnp.abs(p02 - g02) + jnp.abs(p12 - g12))

    # Reduce over batch (sublanes) in-kernel; store a lane-dense (1, 1, Ft) row.
    out_ref[...] = jnp.sum(total, axis=0, keepdims=True)[None]


def _ceil_to(x, m):
    return -(-x // m) * m


@functools.partial(jax.jit, static_argnames=("block_b", "block_f"))
def _edge_diff_partial_sums(pred_pack, gt_pack, *, block_b, block_f):
    three, three2, b_pad, f_pad = pred_pack.shape
    assert three == 3 and three2 == 3
    assert b_pad % block_b == 0 and f_pad % block_f == 0
    assert block_b % 8 == 0 and block_f % 128 == 0
    nb, nf = b_pad // block_b, f_pad // block_f

    in_spec = pl.BlockSpec((3, 3, block_b, block_f), lambda b, f: (0, 0, b, f))
    out_spec = pl.BlockSpec((1, 1, block_f), lambda b, f: (b, 0, f))

    out = pl.pallas_call(
        _edge_loss_kernel,
        out_shape=jax.ShapeDtypeStruct((nb, 1, f_pad), jnp.float32),
        grid_spec=pltpu.PrefetchScalarGridSpec(
            num_scalar_prefetch=0,
            grid=(nb, nf),
            in_specs=[in_spec, in_spec],
            out_specs=out_spec,
        ),
        compiler_params=pltpu.CompilerParams(
            dimension_semantics=("parallel", "parallel"),
            vmem_limit_bytes=32 * 1024 * 1024,
        ),
    )(pred_pack, gt_pack)
    return jnp.sum(out)


def edge_length_gt_loss(pred_vertices, gt_vertices, has_mesh, face):
    """JAX/Pallas equivalent of EdgeLengthGTLoss.forward.

    pred_vertices, gt_vertices: (B, V, 3) float32
    has_mesh: (B,) int (1 = sample has a mesh)
    face: (F, 3) int triangle vertex indices
    """
    pred = jnp.asarray(pred_vertices, jnp.float32)
    gt = jnp.asarray(gt_vertices, jnp.float32)
    has_mesh = jnp.asarray(has_mesh).astype(jnp.int32)
    face = jnp.asarray(face).astype(jnp.int32)

    batch = int(pred.shape[0])
    f_real = int(face.shape[0])

    # ---- static tile selection (~2 MiB per input block) ----
    target = 2 * 1024 * 1024
    f_pad = _ceil_to(f_real, 128)
    max_f = max(128, (target // (9 * 4 * 8)) // 128 * 128)
    block_f = min(f_pad, max_f)
    f_pad = _ceil_to(f_pad, block_f)
    max_b = max(8, (target // (9 * 4 * block_f)) // 8 * 8)
    block_b = min(_ceil_to(batch, 8), max_b)
    b_pad = _ceil_to(batch, block_b)

    # Pad faces with degenerate (0, 0, 0) triangles -> their pred/gt edge
    # lengths are both sqrt(1e-8), so they contribute exactly 0.
    if f_pad != f_real:
        face = jnp.concatenate(
            [face, jnp.zeros((f_pad - f_real, 3), jnp.int32)], axis=0)

    # Exact has_mesh masking: zero invalid samples' vertices so both edge
    # lengths equal sqrt(1e-8) and every |pred - gt| diff is exactly 0.
    maskf = (has_mesh == 1).astype(jnp.float32)
    pred_m = pred * maskf[:, None, None]
    gt_m = gt * maskf[:, None, None]
    if b_pad != batch:
        pad = ((0, b_pad - batch), (0, 0), (0, 0))
        pred_m = jnp.pad(pred_m, pad)   # zero rows contribute exactly 0
        gt_m = jnp.pad(gt_m, pad)

    # Gather + pack into (3 xyz, 3 face-vertex, B_pad, F_pad): faces on lanes,
    # batch on sublanes, all kernel slicing on leading dims.
    # TODO(synk): the vertex gather stays in XLA; an in-kernel gather from a
    # VMEM-resident (V, 3) vertex table would roughly halve HBM traffic but
    # needs a Mosaic dynamic-gather path.
    def pack(v):
        vt = jnp.transpose(v, (2, 0, 1))                                # (3, B, V)
        cols = [jnp.take(vt, face[:, j], axis=2) for j in range(3)]     # (3, B, F)
        return jnp.stack(cols, axis=1)                                  # (3, 3, B, F)

    diff_sum = _edge_diff_partial_sums(pack(pred_m), pack(gt_m),
                                       block_b=block_b, block_f=block_f)

    # Masked mean in glue: mean over (n_valid, 3 * F_real) edge diffs.
    n_valid = jnp.sum(maskf)
    denom = n_valid * (3.0 * f_real)
    return jnp.where(n_valid > 0, diff_sum / denom, jnp.float32(0.0))


def _reference_loss(pred, gt, has_mesh, face):
    """NumPy port of the PyTorch forward for verification."""
    pred = np.asarray(pred, dtype=np.float32)
    gt = np.asarray(gt, dtype=np.float32)
    mask = np.asarray(has_mesh) == 1
    coord_out = pred[mask]
    coord_gt = gt[mask]
    if len(coord_gt) == 0:
        return np.float32(0.0)

    def d(c, a, b):
        return np.sqrt(
            np.sum((c[:, face[:, a], :] - c[:, face[:, b], :]) ** 2,
                   axis=2, keepdims=True) + 1e-8)

    diff1 = np.abs(d(coord_out, 0, 1) - d(coord_gt, 0, 1))
    diff2 = np.abs(d(coord_out, 0, 2) - d(coord_gt, 0, 2))
    diff3 = np.abs(d(coord_out, 1, 2) - d(coord_gt, 1, 2))
    edge_diff = np.concatenate((diff1, diff2, diff3), axis=1)
    return edge_diff.mean()


if __name__ == "__main__":
    B, V, F = 4, 32, 64  # small shapes: batch, vertices, faces

    key = jax.random.PRNGKey(0)
    k1, k2, k3 = jax.random.split(key, 3)

    pred_vertices = jax.random.normal(k1, (B, V, 3), dtype=jnp.float32)
    gt_vertices = jax.random.normal(k2, (B, V, 3), dtype=jnp.float32)
    face = jax.random.randint(k3, (F, 3), 0, V, dtype=jnp.int32)
    has_mesh = jnp.array([1, 0, 1, 1], dtype=jnp.int32)

    loss = edge_length_gt_loss(pred_vertices, gt_vertices, has_mesh, face)
    loss = jax.block_until_ready(loss)

    ref = _reference_loss(np.asarray(pred_vertices), np.asarray(gt_vertices),
                          np.asarray(has_mesh), np.asarray(face))
    if not np.allclose(np.asarray(loss), ref, rtol=1e-5, atol=1e-6):
        raise AssertionError(f"mismatch: pallas={float(loss)} ref={float(ref)}")

    print("KERNEL_OK")
</pallas_src>

<mosaic_0001>
module attributes {stable_mosaic.version = 11 : i64} {
  func.func @_edge_loss_kernel(%arg0: i32, %arg1: i32, %arg2: memref<3x3x8x128xf32, #tpu.memory_space<vmem>>, %arg3: memref<3x3x8x128xf32, #tpu.memory_space<vmem>>, %arg4: memref<1x1x128xf32, #tpu.memory_space<vmem>>) attributes {dimension_semantics = [#tpu.dimension_semantics<parallel>, #tpu.dimension_semantics<parallel>], iteration_bounds = array<i64: 1, 1>, scalar_prefetch = 0 : i64, scratch_operands = 0 : i64, tpu.core_type = #tpu.core_type<tc>, window_params = [{transform_indices = @transform_0, window_bounds = array<i64: 3, 3, 8, 128>}, {transform_indices = @transform_1, window_bounds = array<i64: 3, 3, 8, 128>}, {transform_indices = @transform_2, window_bounds = array<i64: 1, 1, 128>}]} {
    %c0 = arith.constant 0 : index
    %c0_0 = arith.constant 0 : index
    %c0_1 = arith.constant 0 : index
    %c0_2 = arith.constant 0 : index
    %0 = vector.load %arg2[%c0, %c0_0, %c0_1, %c0_2] : memref<3x3x8x128xf32, #tpu.memory_space<vmem>>, vector<1x1x8x128xf32>
    %1 = vector.shape_cast %0 : vector<1x1x8x128xf32> to vector<8x128xf32>
    %c0_3 = arith.constant 0 : index
    %c1 = arith.constant 1 : index
    %c0_4 = arith.constant 0 : index
    %c0_5 = arith.constant 0 : index
    %2 = vector.load %arg2[%c0_3, %c1, %c0_4, %c0_5] : memref<3x3x8x128xf32, #tpu.memory_space<vmem>>, vector<1x1x8x128xf32>
    %3 = vector.shape_cast %2 : vector<1x1x8x128xf32> to vector<8x128xf32>
    %c0_6 = arith.constant 0 : index
    %c2 = arith.constant 2 : index
    %c0_7 = arith.constant 0 : index
    %c0_8 = arith.constant 0 : index
    %4 = vector.load %arg2[%c0_6, %c2, %c0_7, %c0_8] : memref<3x3x8x128xf32, #tpu.memory_space<vmem>>, vector<1x1x8x128xf32>
    %5 = vector.shape_cast %4 : vector<1x1x8x128xf32> to vector<8x128xf32>
    %c1_9 = arith.constant 1 : index
    %c0_10 = arith.constant 0 : index
    %c0_11 = arith.constant 0 : index
    %c0_12 = arith.constant 0 : index
    %6 = vector.load %arg2[%c1_9, %c0_10, %c0_11, %c0_12] : memref<3x3x8x128xf32, #tpu.memory_space<vmem>>, vector<1x1x8x128xf32>
    %7 = vector.shape_cast %6 : vector<1x1x8x128xf32> to vector<8x128xf32>
    %c1_13 = arith.constant 1 : index
    %c1_14 = arith.constant 1 : index
    %c0_15 = arith.constant 0 : index
    %c0_16 = arith.constant 0 : index
    %8 = vector.load %arg2[%c1_13, %c1_14, %c0_15, %c0_16] : memref<3x3x8x128xf32, #tpu.memory_space<vmem>>, vector<1x1x8x128xf32>
    %9 = vector.shape_cast %8 : vector<1x1x8x128xf32> to vector<8x128xf32>
    %c1_17 = arith.constant 1 : index
    %c2_18 = arith.constant 2 : index
    %c0_19 = arith.constant 0 : index
    %c0_20 = arith.constant 0 : index
    %10 = vector.load %arg2[%c1_17, %c2_18, %c0_19, %c0_20] : memref<3x3x8x128xf32, #tpu.memory_space<vmem>>, vector<1x1x8x128xf32>
    %11 = vector.shape_cast %10 : vector<1x1x8x128xf32> to vector<8x128xf32>
    %c2_21 = arith.constant 2 : index
    %c0_22 = arith.constant 0 : index
    %c0_23 = arith.constant 0 : index
    %c0_24 = arith.constant 0 : index
    %12 = vector.load %arg2[%c2_21, %c0_22, %c0_23, %c0_24] : memref<3x3x8x128xf32, #tpu.memory_space<vmem>>, vector<1x1x8x128xf32>
    %13 = vector.shape_cast %12 : vector<1x1x8x128xf32> to vector<8x128xf32>
    %c2_25 = arith.constant 2 : index
    %c1_26 = arith.constant 1 : index
    %c0_27 = arith.constant 0 : index
    %c0_28 = arith.constant 0 : index
    %14 = vector.load %arg2[%c2_25, %c1_26, %c0_27, %c0_28] : memref<3x3x8x128xf32, #tpu.memory_space<vmem>>, vector<1x1x8x128xf32>
    %15 = vector.shape_cast %14 : vector<1x1x8x128xf32> to vector<8x128xf32>
    %c2_29 = arith.constant 2 : index
    %c2_30 = arith.constant 2 : index
    %c0_31 = arith.constant 0 : index
    %c0_32 = arith.constant 0 : index
    %16 = vector.load %arg2[%c2_29, %c2_30, %c0_31, %c0_32] : memref<3x3x8x128xf32, #tpu.memory_space<vmem>>, vector<1x1x8x128xf32>
    %17 = vector.shape_cast %16 : vector<1x1x8x128xf32> to vector<8x128xf32>
    %18 = arith.subf %1, %3 : vector<8x128xf32>
    %19 = arith.subf %7, %9 : vector<8x128xf32>
    %20 = arith.subf %13, %15 : vector<8x128xf32>
    %21 = arith.mulf %18, %18 : vector<8x128xf32>
    %22 = arith.mulf %19, %19 : vector<8x128xf32>
    %23 = arith.addf %21, %22 : vector<8x128xf32>
    %24 = arith.mulf %20, %20 : vector<8x128xf32>
    %25 = arith.addf %23, %24 : vector<8x128xf32>
    %cst = arith.constant 9.99999993E-9 : f32
    %26 = vector.broadcast %cst : f32 to vector<8x128xf32>
    %27 = arith.addf %25, %26 : vector<8x128xf32>
    %28 = math.sqrt %27 : vector<8x128xf32>
    %29 = arith.subf %1, %5 : vector<8x128xf32>
    %30 = arith.subf %7, %11 : vector<8x128xf32>
    %31 = arith.subf %13, %17 : vector<8x128xf32>
    %32 = arith.mulf %29, %29 : vector<8x128xf32>
    %33 = arith.mulf %30, %30 : vector<8x128xf32>
    %34 = arith.addf %32, %33 : vector<8x128xf32>
    %35 = arith.mulf %31, %31 : vector<8x128xf32>
    %36 = arith.addf %34, %35 : vector<8x128xf32>
    %cst_33 = arith.constant 9.99999993E-9 : f32
    %37 = vector.broadcast %cst_33 : f32 to vector<8x128xf32>
    %38 = arith.addf %36, %37 : vector<8x128xf32>
    %39 = math.sqrt %38 : vector<8x128xf32>
    %40 = arith.subf %3, %5 : vector<8x128xf32>
    %41 = arith.subf %9, %11 : vector<8x128xf32>
    %42 = arith.subf %15, %17 : vector<8x128xf32>
    %43 = arith.mulf %40, %40 : vector<8x128xf32>
    %44 = arith.mulf %41, %41 : vector<8x128xf32>
    %45 = arith.addf %43, %44 : vector<8x128xf32>
    %46 = arith.mulf %42, %42 : vector<8x128xf32>
    %47 = arith.addf %45, %46 : vector<8x128xf32>
    %cst_34 = arith.constant 9.99999993E-9 : f32
    %48 = vector.broadcast %cst_34 : f32 to vector<8x128xf32>
    %49 = arith.addf %47, %48 : vector<8x128xf32>
    %50 = math.sqrt %49 : vector<8x128xf32>
    %c0_35 = arith.constant 0 : index
    %c0_36 = arith.constant 0 : index
    %c0_37 = arith.constant 0 : index
    %c0_38 = arith.constant 0 : index
    %51 = vector.load %arg3[%c0_35, %c0_36, %c0_37, %c0_38] : memref<3x3x8x128xf32, #tpu.memory_space<vmem>>, vector<1x1x8x128xf32>
    %52 = vector.shape_cast %51 : vector<1x1x8x128xf32> to vector<8x128xf32>
    %c0_39 = arith.constant 0 : index
    %c1_40 = arith.constant 1 : index
    %c0_41 = arith.constant 0 : index
    %c0_42 = arith.constant 0 : index
    %53 = vector.load %arg3[%c0_39, %c1_40, %c0_41, %c0_42] : memref<3x3x8x128xf32, #tpu.memory_space<vmem>>, vector<1x1x8x128xf32>
    %54 = vector.shape_cast %53 : vector<1x1x8x128xf32> to vector<8x128xf32>
    %c0_43 = arith.constant 0 : index
    %c2_44 = arith.constant 2 : index
    %c0_45 = arith.constant 0 : index
    %c0_46 = arith.constant 0 : index
    %55 = vector.load %arg3[%c0_43, %c2_44, %c0_45, %c0_46] : memref<3x3x8x128xf32, #tpu.memory_space<vmem>>, vector<1x1x8x128xf32>
    %56 = vector.shape_cast %55 : vector<1x1x8x128xf32> to vector<8x128xf32>
    %c1_47 = arith.constant 1 : index
    %c0_48 = arith.constant 0 : index
    %c0_49 = arith.constant 0 : index
    %c0_50 = arith.constant 0 : index
    %57 = vector.load %arg3[%c1_47, %c0_48, %c0_49, %c0_50] : memref<3x3x8x128xf32, #tpu.memory_space<vmem>>, vector<1x1x8x128xf32>
    %58 = vector.shape_cast %57 : vector<1x1x8x128xf32> to vector<8x128xf32>
    %c1_51 = arith.constant 1 : index
    %c1_52 = arith.constant 1 : index
    %c0_53 = arith.constant 0 : index
    %c0_54 = arith.constant 0 : index
    %59 = vector.load %arg3[%c1_51, %c1_52, %c0_53, %c0_54] : memref<3x3x8x128xf32, #tpu.memory_space<vmem>>, vector<1x1x8x128xf32>
    %60 = vector.shape_cast %59 : vector<1x1x8x128xf32> to vector<8x128xf32>
    %c1_55 = arith.constant 1 : index
    %c2_56 = arith.constant 2 : index
    %c0_57 = arith.constant 0 : index
    %c0_58 = arith.constant 0 : index
    %61 = vector.load %arg3[%c1_55, %c2_56, %c0_57, %c0_58] : memref<3x3x8x128xf32, #tpu.memory_space<vmem>>, vector<1x1x8x128xf32>
    %62 = vector.shape_cast %61 : vector<1x1x8x128xf32> to vector<8x128xf32>
    %c2_59 = arith.constant 2 : index
    %c0_60 = arith.constant 0 : index
    %c0_61 = arith.constant 0 : index
    %c0_62 = arith.constant 0 : index
    %63 = vector.load %arg3[%c2_59, %c0_60, %c0_61, %c0_62] : memref<3x3x8x128xf32, #tpu.memory_space<vmem>>, vector<1x1x8x128xf32>
    %64 = vector.shape_cast %63 : vector<1x1x8x128xf32> to vector<8x128xf32>
    %c2_63 = arith.constant 2 : index
    %c1_64 = arith.constant 1 : index
    %c0_65 = arith.constant 0 : index
    %c0_66 = arith.constant 0 : index
    %65 = vector.load %arg3[%c2_63, %c1_64, %c0_65, %c0_66] : memref<3x3x8x128xf32, #tpu.memory_space<vmem>>, vector<1x1x8x128xf32>
    %66 = vector.shape_cast %65 : vector<1x1x8x128xf32> to vector<8x128xf32>
    %c2_67 = arith.constant 2 : index
    %c2_68 = arith.constant 2 : index
    %c0_69 = arith.constant 0 : index
    %c0_70 = arith.constant 0 : index
    %67 = vector.load %arg3[%c2_67, %c2_68, %c0_69, %c0_70] : memref<3x3x8x128xf32, #tpu.memory_space<vmem>>, vector<1x1x8x128xf32>
    %68 = vector.shape_cast %67 : vector<1x1x8x128xf32> to vector<8x128xf32>
    %69 = arith.subf %52, %54 : vector<8x128xf32>
    %70 = arith.subf %58, %60 : vector<8x128xf32>
    %71 = arith.subf %64, %66 : vector<8x128xf32>
    %72 = arith.mulf %69, %69 : vector<8x128xf32>
    %73 = arith.mulf %70, %70 : vector<8x128xf32>
    %74 = arith.addf %72, %73 : vector<8x128xf32>
    %75 = arith.mulf %71, %71 : vector<8x128xf32>
    %76 = arith.addf %74, %75 : vector<8x128xf32>
    %cst_71 = arith.constant 9.99999993E-9 : f32
    %77 = vector.broadcast %cst_71 : f32 to vector<8x128xf32>
    %78 = arith.addf %76, %77 : vector<8x128xf32>
    %79 = math.sqrt %78 : vector<8x128xf32>
    %80 = arith.subf %52, %56 : vector<8x128xf32>
    %81 = arith.subf %58, %62 : vector<8x128xf32>
    %82 = arith.subf %64, %68 : vector<8x128xf32>
    %83 = arith.mulf %80, %80 : vector<8x128xf32>
    %84 = arith.mulf %81, %81 : vector<8x128xf32>
    %85 = arith.addf %83, %84 : vector<8x128xf32>
    %86 = arith.mulf %82, %82 : vector<8x128xf32>
    %87 = arith.addf %85, %86 : vector<8x128xf32>
    %cst_72 = arith.constant 9.99999993E-9 : f32
    %88 = vector.broadcast %cst_72 : f32 to vector<8x128xf32>
    %89 = arith.addf %87, %88 : vector<8x128xf32>
    %90 = math.sqrt %89 : vector<8x128xf32>
    %91 = arith.subf %54, %56 : vector<8x128xf32>
    %92 = arith.subf %60, %62 : vector<8x128xf32>
    %93 = arith.subf %66, %68 : vector<8x128xf32>
    %94 = arith.mulf %91, %91 : vector<8x128xf32>
    %95 = arith.mulf %92, %92 : vector<8x128xf32>
    %96 = arith.addf %94, %95 : vector<8x128xf32>
    %97 = arith.mulf %93, %93 : vector<8x128xf32>
    %98 = arith.addf %96, %97 : vector<8x128xf32>
    %cst_73 = arith.constant 9.99999993E-9 : f32
    %99 = vector.broadcast %cst_73 : f32 to vector<8x128xf32>
    %100 = arith.addf %98, %99 : vector<8x128xf32>
    %101 = math.sqrt %100 : vector<8x128xf32>
    %102 = arith.subf %28, %79 : vector<8x128xf32>
    %103 = math.absf %102 : vector<8x128xf32>
    %104 = arith.subf %39, %90 : vector<8x128xf32>
    %105 = math.absf %104 : vector<8x128xf32>
    %106 = arith.addf %103, %105 : vector<8x128xf32>
    %107 = arith.subf %50, %101 : vector<8x128xf32>
    %108 = math.absf %107 : vector<8x128xf32>
    %109 = arith.addf %106, %108 : vector<8x128xf32>
    %cst_74 = arith.constant dense<0.000000e+00> : vector<128xf32>
    %110 = vector.multi_reduction <add>, %109, %cst_74 [0] : vector<8x128xf32> to vector<128xf32>
    %111 = vector.shape_cast %110 : vector<128xf32> to vector<1x128xf32>
    %112 = vector.shape_cast %111 : vector<1x128xf32> to vector<1x1x128xf32>
    %c0_75 = arith.constant 0 : index
    %c0_76 = arith.constant 0 : index
    %c0_77 = arith.constant 0 : index
    %113 = vector.load %arg4[%c0_75, %c0_76, %c0_77] : memref<1x1x128xf32, #tpu.memory_space<vmem>>, vector<1x1x128xf32>
    tpu.vector_store %arg4[%c0_75, %c0_76, %c0_77], %112 {strides = array<i32>} : memref<1x1x128xf32, #tpu.memory_space<vmem>>, vector<1x1x128xf32>,
    return
  }
  func.func @transform_0(%arg0: i32, %arg1: i32) -> (i32, i32, i32, i32) {
    %c0_i32 = arith.constant 0 : i32
    %c0_i32_0 = arith.constant 0 : i32
    %c0_i32_1 = arith.constant 0 : i32
    return %c0_i32, %c0_i32_0, %arg0, %arg1 : i32, i32, i32, i32
  }
  func.func @transform_1(%arg0: i32, %arg1: i32) -> (i32, i32, i32, i32) {
    %c0_i32 = arith.constant 0 : i32
    %c0_i32_0 = arith.constant 0 : i32
    %c0_i32_1 = arith.constant 0 : i32
    return %c0_i32, %c0_i32_0, %arg0, %arg1 : i32, i32, i32, i32
  }
  func.func @transform_2(%arg0: i32, %arg1: i32) -> (i32, i32, i32) {
    %c0_i32 = arith.constant 0 : i32
    %c0_i32_0 = arith.constant 0 : i32
    return %arg0, %c0_i32, %arg1 : i32, i32, i32
  }
}

</mosaic_0001>

<llo_original>
// kernel: _edge_diff_partial_sums.1
$region0: #{_edge_diff_partial_sums.1}
  #allocation0 [shape = 'u32[]', space=smem, size = 0x4, offset = 0x4, fixed_abs, tag = 'smem constant byte address 0x4 - core index']
  #allocation1 [shape = 'u32[72,128]{1,0:T(1,128)}', space=vmem, size = 0x9000, scoped, tag = 'internal scratch']
  %s0 = inlined_call_operand.hbm [shape: f32[3,3,8,128], index: 0, kind: input, shape index: {}]
  %s1 = inlined_call_operand.hbm [shape: f32[3,3,8,128], index: 1, kind: input, shape index: {}]
  %s2 = inlined_call_operand.vmem [shape: f32[1,1,128], index: 2, kind: output, shape index: {}]
  %s3 = sld [smem:[#allocation0]]
  $region26: #{_edge_diff_partial_sums.1} parent=0
    _
  %s5 = ssub.s32 1, %s3
  %s6 = scalar_select 0, %s5, %s3
  $region1: #{_edge_diff_partial_sums.1} parent=0
    #allocation2 [shape = 'u8[36864]{0}', space=vmem, size = 0x9000, scoped, tag = 'input window, operand 0, single buffered']
    #allocation3 [shape = 's32[1]{0}', space=sflag, size = 0x4, scoped, tag = 'scoped memory for _edge_diff_partial_sums.1']
    #allocation4 [shape = 'u8[36864]{0}', space=vmem, size = 0x9000, scoped, tag = 'input window, operand 1, single buffered']
    #allocation5 [shape = 's32[1]{0}', space=sflag, size = 0x4, scoped, tag = 'scoped memory for _edge_diff_partial_sums.1']
    %7 = vsyncpa [#allocation3], 0
    %8 = vsyncpa [#allocation5], 0
    // Predicated region
    $region2: #{_edge_diff_partial_sums.1} parent=1 // pred_check
      _
    $region3: #{_edge_diff_partial_sums.1} parent=1 // pred_check_branch
      %10 = sbr.rel (0) target = $region5
    $region4: #{_edge_diff_partial_sums.1} parent=1 // pred_region
      %12 = vsyncadd [#allocation3], 0
      %s13 = sshll.u32 %s0, 4
      %s14 = int_to_ptr.hbm [resolvable:$true] %s13
      %s15 = sshll.u32 [#allocation2], 4
      %s16 = int_to_ptr.vmem [resolvable:$true] %s15
      %21 = dma.hbm_to_vmem [thread:$0]  %s14, 1152, %s16, [#allocation3], 128, 128, 8
    $region5: #{_edge_diff_partial_sums.1} parent=1 // pred_fallthru
      _
    // Predicated region
    $region6: #{_edge_diff_partial_sums.1} parent=1 // pred_check
      _
    $region7: #{_edge_diff_partial_sums.1} parent=1 // pred_check_branch
      %23 = sbr.rel (0) target = $region9
    $region8: #{_edge_diff_partial_sums.1} parent=1 // pred_region
      %25 = vsyncadd [#allocation5], 0
      %s26 = sshll.u32 %s1, 4
      %s27 = int_to_ptr.hbm [resolvable:$true] %s26
      %s28 = sshll.u32 [#allocation4], 4
      %s29 = int_to_ptr.vmem [resolvable:$true] %s28
      %34 = dma.hbm_to_vmem [thread:$0]  %s27, 1152, %s29, [#allocation5], 128, 128, 8
    $region9: #{_edge_diff_partial_sums.1} parent=1 // pred_fallthru
      _
    // Predicated region
    $region10: #{_edge_diff_partial_sums.1} parent=1 // pred_check
      _
    $region11: #{_edge_diff_partial_sums.1} parent=1 // pred_check_branch
      %36 = sbr.rel (0) target = $region13
    $region12: #{_edge_diff_partial_sums.1} parent=1 // pred_region
      %38 = dma.done [#allocation3], 1152
    $region13: #{_edge_diff_partial_sums.1} parent=1 // pred_fallthru
      _
    // Predicated region
    $region14: #{_edge_diff_partial_sums.1} parent=1 // pred_check
      _
    $region15: #{_edge_diff_partial_sums.1} parent=1 // pred_check_branch
      %40 = sbr.rel (0) target = $region17
    $region16: #{_edge_diff_partial_sums.1} parent=1 // pred_region
      %42 = dma.done [#allocation5], 1152
    $region17: #{_edge_diff_partial_sums.1} parent=1 // pred_fallthru
      _
    %v43 = vld [vmem:[#allocation2] sm:$0xff]
    %s44 = scalar_lea.vmem [#allocation2], 8
    %v45 = vld [vmem:[%s44] sm:$0xff]
    %s46 = scalar_lea.vmem [#allocation2], 16
    %v47 = vld [vmem:[%s46] sm:$0xff]
    %s48 = scalar_lea.vmem [#allocation2], 24
    %v49 = vld [vmem:[%s48] sm:$0xff]
    %s50 = scalar_lea.vmem [#allocation2], 32
    %v51 = vld [vmem:[%s50] sm:$0xff]
    %s52 = scalar_lea.vmem [#allocation2], 40
    %v53 = vld [vmem:[%s52] sm:$0xff]
    %s54 = scalar_lea.vmem [#allocation2], 48
    %v55 = vld [vmem:[%s54] sm:$0xff]
    %s56 = scalar_lea.vmem [#allocation2], 56
    %v57 = vld [vmem:[%s56] sm:$0xff]
    %s58 = scalar_lea.vmem [#allocation2], 64
    %v59 = vld [vmem:[%s58] sm:$0xff]
    %v60 = vsub.f32 %v43, %v45
    %v61 = vsub.f32 %v49, %v51
    %v62 = vsub.f32 %v55, %v57
    %v63 = vmul.f32 %v60, %v60
    %v64 = vmul.f32 %v61, %v61
    %v65 = vadd.f32 %v63, %v64
    %v66 = vmul.f32 %v62, %v62
    %v67 = vadd.f32 %v65, %v66
    %v68 = vadd.f32 %v67, 1e-08
    %v69 = vrsqrt.pop %v68
    %v70 = vmul.f32 %v69, %v68
    %v71 = vmul.f32 %v70, %v69
    %v72 = vmul.f32 0.5, %v71
    %v73 = vsub.f32 1.5, %v72
    %v74 = vmul.f32 %v69, %v73
    %v75 = vmul.f32 %v68, %v74
    %vm76 = vcmp.eq.f32.partialorder %v68, inf
    %v77 = vsel %vm76, %v68, %v75
    %vm78 = vcmp.eq.f32.partialorder %v68, 0.0
    %v79 = vand.u32 %v68, 2147483648
    %v80 = vsel %vm78, %v79, %v77
    %v81 = vsub.f32 %v43, %v47
    %v82 = vsub.f32 %v49, %v53
    %v83 = vsub.f32 %v55, %v59
    %v84 = vmul.f32 %v81, %v81
    %v85 = vmul.f32 %v82, %v82
    %v86 = vadd.f32 %v84, %v85
    %v87 = vmul.f32 %v83, %v83
    %v88 = vadd.f32 %v86, %v87
    %v89 = vadd.f32 %v88, 1e-08
    %v90 = vrsqrt.pop %v89
    %v91 = vmul.f32 %v90, %v89
    %v92 = vmul.f32 %v91, %v90
    %v93 = vmul.f32 0.5, %v92
    %v94 = vsub.f32 1.5, %v93
    %v95 = vmul.f32 %v90, %v94
    %v96 = vmul.f32 %v89, %v95
    %vm97 = vcmp.eq.f32.partialorder %v89, inf
    %v98 = vsel %vm97, %v89, %v96
    %vm99 = vcmp.eq.f32.partialorder %v89, 0.0
    %v100 = vand.u32 %v89, 2147483648
    %v101 = vsel %vm99, %v100, %v98
    %v102 = vsub.f32 %v45, %v47
    %v103 = vsub.f32 %v51, %v53
    %v104 = vsub.f32 %v57, %v59
    %v105 = vmul.f32 %v102, %v102
    %v106 = vmul.f32 %v103, %v103
    %v107 = vadd.f32 %v105, %v106
    %v108 = vmul.f32 %v104, %v104
    %v109 = vadd.f32 %v107, %v108
    %v110 = vadd.f32 %v109, 1e-08
    %v111 = vrsqrt.pop %v110
    %v112 = vmul.f32 %v111, %v110
    %v113 = vmul.f32 %v112, %v111
    %v114 = vmul.f32 0.5, %v113
    %v115 = vsub.f32 1.5, %v114
    %v116 = vmul.f32 %v111, %v115
    %v117 = vmul.f32 %v110, %v116
    %vm118 = vcmp.eq.f32.partialorder %v110, inf
    %v119 = vsel %vm118, %v110, %v117
    %vm120 = vcmp.eq.f32.partialorder %v110, 0.0
    %v121 = vand.u32 %v110, 2147483648
    %v122 = vsel %vm120, %v121, %v119
    %v123 = vld [vmem:[#allocation4] sm:$0xff]
    %s124 = scalar_lea.vmem [#allocation4], 8
    %v125 = vld [vmem:[%s124] sm:$0xff]
    %s126 = scalar_lea.vmem [#allocation4], 16
    %v127 = vld [vmem:[%s126] sm:$0xff]
    %s128 = scalar_lea.vmem [#allocation4], 24
    %v129 = vld [vmem:[%s128] sm:$0xff]
    %s130 = scalar_lea.vmem [#allocation4], 32
    %v131 = vld [vmem:[%s130] sm:$0xff]
    %s132 = scalar_lea.vmem [#allocation4], 40
    %v133 = vld [vmem:[%s132] sm:$0xff]
    %s134 = scalar_lea.vmem [#allocation4], 48
    %v135 = vld [vmem:[%s134] sm:$0xff]
    %s136 = scalar_lea.vmem [#allocation4], 56
    %v137 = vld [vmem:[%s136] sm:$0xff]
    %s138 = scalar_lea.vmem [#allocation4], 64
    %v139 = vld [vmem:[%s138] sm:$0xff]
    %v140 = vsub.f32 %v123, %v125
    %v141 = vsub.f32 %v129, %v131
    %v142 = vsub.f32 %v135, %v137
    %v143 = vmul.f32 %v140, %v140
    %v144 = vmul.f32 %v141, %v141
    %v145 = vadd.f32 %v143, %v144
    %v146 = vmul.f32 %v142, %v142
    %v147 = vadd.f32 %v145, %v146
    %v148 = vadd.f32 %v147, 1e-08
    %v149 = vrsqrt.pop %v148
    %v150 = vmul.f32 %v149, %v148
    %v151 = vmul.f32 %v150, %v149
    %v152 = vmul.f32 0.5, %v151
    %v153 = vsub.f32 1.5, %v152
    %v154 = vmul.f32 %v149, %v153
    %v155 = vmul.f32 %v148, %v154
    %vm156 = vcmp.eq.f32.partialorder %v148, inf
    %v157 = vsel %vm156, %v148, %v155
    %vm158 = vcmp.eq.f32.partialorder %v148, 0.0
    %v159 = vand.u32 %v148, 2147483648
    %v160 = vsel %vm158, %v159, %v157
    %v161 = vsub.f32 %v123, %v127
    %v162 = vsub.f32 %v129, %v133
    %v163 = vsub.f32 %v135, %v139
    %v164 = vmul.f32 %v161, %v161
    %v165 = vmul.f32 %v162, %v162
    %v166 = vadd.f32 %v164, %v165
    %v167 = vmul.f32 %v163, %v163
    %v168 = vadd.f32 %v166, %v167
    %v169 = vadd.f32 %v168, 1e-08
    %v170 = vrsqrt.pop %v169
    %v171 = vmul.f32 %v170, %v169
    %v172 = vmul.f32 %v171, %v170
    %v173 = vmul.f32 0.5, %v172
    %v174 = vsub.f32 1.5, %v173
    %v175 = vmul.f32 %v170, %v174
    %v176 = vmul.f32 %v169, %v175
    %vm177 = vcmp.eq.f32.partialorder %v169, inf
    %v178 = vsel %vm177, %v169, %v176
    %vm179 = vcmp.eq.f32.partialorder %v169, 0.0
    %v180 = vand.u32 %v169, 2147483648
    %v181 = vsel %vm179, %v180, %v178
    %v182 = vsub.f32 %v125, %v127
    %v183 = vsub.f32 %v131, %v133
    %v184 = vsub.f32 %v137, %v139
    %v185 = vmul.f32 %v182, %v182
    %v186 = vmul.f32 %v183, %v183
    %v187 = vadd.f32 %v185, %v186
    %v188 = vmul.f32 %v184, %v184
    %v189 = vadd.f32 %v187, %v188
    %v190 = vadd.f32 %v189, 1e-08
    %v191 = vrsqrt.pop %v190
    %v192 = vmul.f32 %v191, %v190
    %v193 = vmul.f32 %v192, %v191
    %v194 = vmul.f32 0.5, %v193
    %v195 = vsub.f32 1.5, %v194
    %v196 = vmul.f32 %v191, %v195
    %v197 = vmul.f32 %v190, %v196
    %vm198 = vcmp.eq.f32.partialorder %v190, inf
    %v199 = vsel %vm198, %v190, %v197
    %vm200 = vcmp.eq.f32.partialorder %v190, 0.0
    %v201 = vand.u32 %v190, 2147483648
    %v202 = vsel %vm200, %v201, %v199
    %v203 = vsub.f32 %v80, %v160
    %v204 = vand.u32 2147483647, %v203
    %v205 = vsub.f32 %v101, %v181
    %v206 = vand.u32 2147483647, %v205
    %v207 = vadd.f32 %v204, %v206
    %v208 = vsub.f32 %v122, %v202
    %v209 = vand.u32 2147483647, %v208
    %v210 = vadd.f32 %v207, %v209
    %v211 = vrot.slane %v210, 4
    %v212 = vadd.f32 %v210, %v211
    %v213 = vrot.slane %v212, 2
    %v214 = vadd.f32 %v212, %v213
    %v215 = vrot.slane %v214, 1
    %v216 = vadd.f32 %v214, %v215
    %217 = vst [vmem:[%s2] sm:$0x1] %v216
    // Predicated region
    $region18: #{_edge_diff_partial_sums.1} parent=1 // pred_check
      _
    $region19: #{_edge_diff_partial_sums.1} parent=1 // pred_check_branch
      %219 = sbr.rel (0) target = $region21
    $region20: #{_edge_diff_partial_sums.1} parent=1 // pred_region
      _
    $region21: #{_edge_diff_partial_sums.1} parent=1 // pred_fallthru
      _
    // Predicated region
    $region22: #{_edge_diff_partial_sums.1} parent=1 // pred_check
      _
    $region23: #{_edge_diff_partial_sums.1} parent=1 // pred_check_branch
      %221 = sbr.rel (0) target = $region25
    $region24: #{_edge_diff_partial_sums.1} parent=1 // pred_region
      _
    $region25: #{_edge_diff_partial_sums.1} parent=1 // pred_fallthru
      _
    %222 = vsyncpa [#allocation3], 1
    %223 = vsyncpa [#allocation5], 1

</llo_original>
